<compile_context>
chip_gen: v6e
topology: v6e:2x2x1
jax: 0.10.0
libtpu: 0.0.40
codegen_flags: <defaults>
</compile_context>

<pallas_src>
import functools

import jax
import jax.numpy as jnp
from jax.experimental import pallas as pl
from jax.experimental.pallas import tpu as pltpu

LANE = 128
SUBLANE = 8


def _round_up(x, m):
    return (x + m - 1) // m * m


def _apply_activation(y, activation, prelu_alpha):
    if activation == "relu":
        return jnp.maximum(y, 0.0)
    if activation == "tanh":
        return jnp.tanh(y)
    if activation == "prelu":
        return jnp.where(y > 0, y, prelu_alpha * y)
    return y


# --------------------------------- kernels ----------------------------------


def _conv_stats_kernel(x_ref, w_ref, stats_ref, *, valid_rows, row_tile):
    """BN pass 1: conv tile -> per-tile per-channel sum and M2 (no y writeback).

    x_ref    : (TM, Kc)   bf16 im2col rows
    w_ref    : (Kc, Cpad) bf16 weights (Cout zero-padded to 128 lanes)
    stats_ref: (8, Cpad)  f32  row 0 = sum(y), row 1 = sum((y - mu_tile)^2)

    Rows with global index >= valid_rows (zero-padded tail of the last tile)
    are masked out so the per-tile mean / M2 stay exact.
    """
    i = pl.program_id(0)
    y = jnp.dot(x_ref[...], w_ref[...], preferred_element_type=jnp.float32)

    gid = i * row_tile + jax.lax.broadcasted_iota(jnp.int32, y.shape, 0)
    valid = gid < valid_rows
    n_i = jnp.minimum(row_tile, valid_rows - i * row_tile).astype(jnp.float32)

    yv = jnp.where(valid, y, 0.0)
    ssum = jnp.sum(yv, axis=0, keepdims=True)             # (1, Cpad)
    mu = ssum * (1.0 / n_i)                               # per-tile mean
    dev = jnp.where(valid, y - mu, 0.0)
    m2 = jnp.sum(dev * dev, axis=0, keepdims=True)        # (1, Cpad)

    # Pack [sum; M2; 0...] into the minimal (8, Cpad) sublane-aligned block.
    row = jax.lax.broadcasted_iota(jnp.int32, stats_ref.shape, 0)
    stats_ref[...] = (jnp.where(row == 0, ssum, 0.0)
                      + jnp.where(row == 1, m2, 0.0))


def _conv_affine_act_kernel(x_ref, w_ref, s_ref, t_ref, o_ref, *,
                            activation, prelu_alpha):
    """Fused conv + per-channel affine (bias or folded BN) + activation."""
    y = jnp.dot(x_ref[...], w_ref[...], preferred_element_type=jnp.float32)
    y = y * s_ref[...] + t_ref[...]
    o_ref[...] = _apply_activation(y, activation, prelu_alpha)


# --------------------------------- wrapper ----------------------------------


def _choose_row_tile(m_rows, kc, cpad, *, max_tile=1024,
                     vmem_budget_bytes=32 * 1024 * 1024):
    """Row-tile size from a VMEM budget.

    Per grid step of the fused pass (the heavier one), double-buffered:
      x tile   : TM * kc   * 2 B  * 2 buffers
      out tile : TM * cpad * 4 B  * 2 buffers
    Resident blocks (weights -- double-buffered by the pipeline even though
    their index_map is constant -- plus scale/shift/stats) are charged
    against the budget.  32 MiB of tiles + residents stays well under the
    48 MiB vmem_limit and v7x's 64 MiB physical VMEM; v5e/v6e (128 MiB) have
    ample headroom.
    """
    per_row = 2 * (kc * 2) + 2 * (cpad * 4)
    resident = 2 * kc * cpad * 2 + 4 * cpad * 4 + 2 * 8 * cpad * 4
    avail = max(vmem_budget_bytes - resident, SUBLANE * per_row)
    tm = (avail // per_row) // SUBLANE * SUBLANE
    tm = int(max(SUBLANE, min(max_tile, tm)))
    # Keep at least 2 row tiles so ("parallel",) can shard across the two
    # TensorCores on v7x (and keep them balanced).
    half = _round_up(-(-m_rows // 2), SUBLANE)
    return min(tm, max(SUBLANE, half))


def conv2d_block(x_nchw, weight, bias=None, gamma=None, beta=None, *,
                 kernel_size, groups=1, padding_mode="zeros",
                 batch_norm=False, activation=None, eps=1e-5,
                 prelu_alpha=0.25, row_tile=None):
    """x_nchw: (N,Cin,H,W), weight: (Cout,Cin,K,K), bias/gamma/beta: (Cout,)."""
    if activation is not None:
        assert activation in {"relu", "tanh", "prelu"}
    if groups != 1:
        raise NotImplementedError("groups != 1")        # TODO(synk): grouped conv
    if padding_mode != "zeros":
        raise NotImplementedError("padding_mode")       # TODO(synk)
    K = kernel_size
    if K % 2 != 1:
        # TODO(synk): even K with padding=K//2 is not SAME in PyTorch (out=H+1)
        raise NotImplementedError("even kernel_size")
    N, Cin, H, W = x_nchw.shape
    Cout = weight.shape[0]
    assert weight.shape == (Cout, Cin, K, K)
    p = K // 2

    m = N * H * W
    kc = K * K * Cin
    cpad = _round_up(Cout, LANE)                        # lane-dense output
    tm = row_tile if row_tile is not None else _choose_row_tile(m, kc, cpad)
    assert tm % SUBLANE == 0
    n_tiles = -(-m // tm)
    m_pad = n_tiles * tm

    # ---- glue: NCHW -> NHWC, cast to bf16 FIRST, zero pad, im2col rows -----
    # (bf16-early halves the HBM write+read cost of the K^2-expanded buffer.)
    x_nhwc = jnp.transpose(x_nchw, (0, 2, 3, 1)).astype(jnp.bfloat16)
    x_sp = jnp.pad(x_nhwc, ((0, 0), (p, p), (p, p), (0, 0)))
    patches = [x_sp[:, kh:kh + H, kw:kw + W, :]
               for kh in range(K) for kw in range(K)]
    x_cols = jnp.concatenate(patches, axis=-1).reshape(m, kc)
    x_cols = jnp.pad(x_cols, ((0, m_pad - m), (0, 0)))   # bf16 (m_pad, kc)

    w_cols = jnp.transpose(weight, (2, 3, 1, 0)).reshape(kc, Cout)
    w_cols = jnp.pad(w_cols.astype(jnp.float32),
                     ((0, 0), (0, cpad - Cout))).astype(jnp.bfloat16)

    cparams = pltpu.CompilerParams(
        dimension_semantics=("parallel",),              # megacore on v7x
        vmem_limit_bytes=48 * 1024 * 1024)
    conv_flops = 2 * m_pad * kc * cpad
    trans = m_pad * cpad if activation == "tanh" else 0

    if batch_norm:
        # ------ pass 1: conv + per-tile batch statistics (no y writeback) ---
        cost1 = pl.CostEstimate(
            flops=conv_flops + 6 * m_pad * cpad, transcendentals=0,
            bytes_accessed=(m_pad * kc * 2 + kc * cpad * 2
                            + n_tiles * 8 * cpad * 4))
        stats = pl.pallas_call(
            functools.partial(_conv_stats_kernel, valid_rows=m, row_tile=tm),
            out_shape=jax.ShapeDtypeStruct((n_tiles * 8, cpad), jnp.float32),
            grid=(n_tiles,),
            in_specs=[pl.BlockSpec((tm, kc), lambda i: (i, 0)),
                      pl.BlockSpec((kc, cpad), lambda i: (0, 0))],
            out_specs=pl.BlockSpec((8, cpad), lambda i: (i, 0)),
            compiler_params=cparams,
            cost_estimate=cost1,
        )(x_cols, w_cols)

        # Tiny cross-tile combine (Chan's parallel mean/M2 -> numerically
        # stable variance).  Train-mode BN makes the conv bias cancel:
        # BN(conv + b) == BN(conv).
        stats = stats.reshape(n_tiles, 8, cpad)
        s_i = stats[:, 0, :]                              # (n_tiles, cpad)
        m2_i = stats[:, 1, :]
        n_i = jnp.minimum(tm, m - jnp.arange(n_tiles) * tm
                          ).astype(jnp.float32)[:, None]  # (n_tiles, 1)
        mean = jnp.sum(s_i, axis=0) / float(m)
        mu_i = s_i / n_i
        m2_tot = (jnp.sum(m2_i, axis=0)
                  + jnp.sum(n_i * (mu_i - mean[None, :]) ** 2, axis=0))
        var = m2_tot / float(m)                           # biased, as BN uses

        g = (jnp.ones((Cout,), jnp.float32) if gamma is None
             else gamma.astype(jnp.float32))
        b = (jnp.zeros((Cout,), jnp.float32) if beta is None
             else beta.astype(jnp.float32))
        g = jnp.pad(g, (0, cpad - Cout))
        b = jnp.pad(b, (0, cpad - Cout))
        scale_v = g * jax.lax.rsqrt(var + eps)
        shift_v = b - mean * scale_v
        scale = scale_v.reshape(1, cpad)
        shift = shift_v.reshape(1, cpad)
    else:
        bias_p = (jnp.zeros((Cout,), jnp.float32) if bias is None
                  else bias.astype(jnp.float32))
        scale = jnp.ones((1, cpad), jnp.float32)
        shift = jnp.pad(bias_p, (0, cpad - Cout)).reshape(1, cpad)

    # ------ fused conv + affine + activation (single pass / BN pass 2) ------
    # The BN path recomputes the conv here instead of round-tripping an
    # (m_pad, cpad) fp32 intermediate through HBM: re-reading bf16 x_cols
    # (kc*2 B/row) is far cheaper than write+read of cpad*4 B/row.
    cost2 = pl.CostEstimate(
        flops=conv_flops + 2 * m_pad * cpad, transcendentals=trans,
        bytes_accessed=(m_pad * kc * 2 + kc * cpad * 2
                        + m_pad * cpad * 4 + 2 * cpad * 4))
    out_p = pl.pallas_call(
        functools.partial(_conv_affine_act_kernel, activation=activation,
                          prelu_alpha=prelu_alpha),
        out_shape=jax.ShapeDtypeStruct((m_pad, cpad), jnp.float32),
        grid=(n_tiles,),
        in_specs=[pl.BlockSpec((tm, kc), lambda i: (i, 0)),
                  pl.BlockSpec((kc, cpad), lambda i: (0, 0)),
                  pl.BlockSpec((1, cpad), lambda i: (0, 0)),
                  pl.BlockSpec((1, cpad), lambda i: (0, 0))],
        out_specs=pl.BlockSpec((tm, cpad), lambda i: (i, 0)),
        compiler_params=cparams,
        cost_estimate=cost2,
    )(x_cols, w_cols, scale, shift)

    out = out_p[:m, :Cout].reshape(N, H, W, Cout)
    return jnp.transpose(out, (0, 3, 1, 2))             # back to NCHW


# -------------------------------- reference ---------------------------------


def _reference(x_nchw, weight, bias, gamma, beta, *, kernel_size,
               batch_norm=False, activation=None, eps=1e-5,
               prelu_alpha=0.25, quantize_bf16=False):
    """Pure-JAX reference (NHWC conv via lax.conv_general_dilated)."""
    Cout = weight.shape[0]
    x = jnp.transpose(x_nchw, (0, 2, 3, 1)).astype(jnp.float32)
    w = jnp.transpose(weight, (2, 3, 1, 0)).astype(jnp.float32)
    if quantize_bf16:  # match the kernel's deliberate bf16-matmul precision
        x = x.astype(jnp.bfloat16).astype(jnp.float32)
        w = w.astype(jnp.bfloat16).astype(jnp.float32)
    y = jax.lax.conv_general_dilated(
        x, w, window_strides=(1, 1), padding="SAME",
        dimension_numbers=("NHWC", "HWIO", "NHWC"))
    if bias is not None:
        y = y + bias.reshape(1, 1, 1, -1)
    if batch_norm:
        g = jnp.ones((Cout,), jnp.float32) if gamma is None else gamma
        b = jnp.zeros((Cout,), jnp.float32) if beta is None else beta
        m = jnp.mean(y, axis=(0, 1, 2), keepdims=True)
        v = jnp.mean((y - m) ** 2, axis=(0, 1, 2), keepdims=True)
        y = (y - m) * jax.lax.rsqrt(v + eps)
        y = y * g.reshape(1, 1, 1, -1) + b.reshape(1, 1, 1, -1)
    if activation == "relu":
        y = jnp.maximum(y, 0.0)
    elif activation == "tanh":
        y = jnp.tanh(y)
    elif activation == "prelu":
        y = jnp.where(y > 0, y, prelu_alpha * y)
    return jnp.transpose(y, (0, 3, 1, 2))


if __name__ == "__main__":
    # Conv2dBlock(in_channels=4, out_channels=8, kernel_size=3, bias=True, ...)
    N, Cin, H, W = 2, 4, 16, 16
    Cout, K = 8, 3

    key = jax.random.PRNGKey(0)
    kx, kw, kb = jax.random.split(key, 3)
    x = jax.random.normal(kx, (N, Cin, H, W), jnp.float32)
    fan_in = Cin * K * K
    bound = 1.0 / (fan_in ** 0.5)
    weight = jax.random.uniform(kw, (Cout, Cin, K, K), jnp.float32, -bound, bound)
    bias = jax.random.uniform(kb, (Cout,), jnp.float32, -bound, bound)
    gamma = jnp.ones((Cout,), jnp.float32)   # BatchNorm2d default init
    beta = jnp.zeros((Cout,), jnp.float32)

    # Config 1: batch_norm=True, activation='relu'  (stats pass + fused pass)
    out1 = conv2d_block(x, weight, bias, gamma, beta, kernel_size=K,
                        batch_norm=True, activation="relu")
    out1 = jax.block_until_ready(out1)
    assert out1.shape == (N, Cout, H, W)
    ref1q = _reference(x, weight, bias, gamma, beta, kernel_size=K,
                       batch_norm=True, activation="relu", quantize_bf16=True)
    ref1f = _reference(x, weight, bias, gamma, beta, kernel_size=K,
                       batch_norm=True, activation="relu")
    assert jnp.allclose(out1, ref1q, atol=2e-3, rtol=2e-3), \
        f"BN+relu err vs bf16-matched ref = {jnp.max(jnp.abs(out1 - ref1q))}"
    assert jnp.allclose(out1, ref1f, atol=5e-2, rtol=5e-2), \
        f"BN+relu err vs fp32 ref = {jnp.max(jnp.abs(out1 - ref1f))}"

    # Config 2: batch_norm=False, activation='prelu'  (single fused pass)
    out2 = conv2d_block(x, weight, bias, None, None, kernel_size=K,
                        batch_norm=False, activation="prelu")
    out2 = jax.block_until_ready(out2)
    ref2q = _reference(x, weight, bias, None, None, kernel_size=K,
                       batch_norm=False, activation="prelu", quantize_bf16=True)
    ref2f = _reference(x, weight, bias, None, None, kernel_size=K,
                       batch_norm=False, activation="prelu")
    assert jnp.allclose(out2, ref2q, atol=2e-3, rtol=2e-3), \
        f"prelu err vs bf16-matched ref = {jnp.max(jnp.abs(out2 - ref2q))}"
    assert jnp.allclose(out2, ref2f, atol=5e-2, rtol=5e-2), \
        f"prelu err vs fp32 ref = {jnp.max(jnp.abs(out2 - ref2f))}"

    print("KERNEL_OK")
</pallas_src>

<mosaic_0001>
module attributes {stable_mosaic.version = 11 : i64} {
  func.func @_conv_stats_kernel(%arg0: i32, %arg1: memref<256x36xbf16, #tpu.memory_space<vmem>>, %arg2: memref<36x128xbf16, #tpu.memory_space<vmem>>, %arg3: memref<8x128xf32, #tpu.memory_space<vmem>>) attributes {dimension_semantics = [#tpu.dimension_semantics<parallel>], iteration_bounds = array<i64: 2>, scalar_prefetch = 0 : i64, scratch_operands = 0 : i64, tpu.core_type = #tpu.core_type<tc>, window_params = [{transform_indices = @transform_0, window_bounds = array<i64: 256, 36>}, {pipeline_mode = #tpu.pipeline_mode<synchronous>, transform_indices = @transform_1, window_bounds = array<i64: 36, 128>}, {transform_indices = @transform_2, window_bounds = array<i64: 8, 128>}]} {
    %c0 = arith.constant 0 : index
    %c0_0 = arith.constant 0 : index
    %0 = vector.load %arg1[%c0, %c0_0] : memref<256x36xbf16, #tpu.memory_space<vmem>>, vector<256x36xbf16>
    %c0_1 = arith.constant 0 : index
    %c0_2 = arith.constant 0 : index
    %1 = vector.load %arg2[%c0_1, %c0_2] : memref<36x128xbf16, #tpu.memory_space<vmem>>, vector<36x128xbf16>
    %cst = arith.constant dense<0.000000e+00> : vector<256x128xf32>
    %2 = tpu.matmul %0, %1, %cst {dimension_numbers = #tpu.dot_dimension_numbers<[1], [0], [0], [1], [0, 0, 1, 1], [], []>} : vector<256x36xbf16>, vector<36x128xbf16>, vector<256x128xf32> -> vector<256x128xf32>
    %c256_i32 = arith.constant 256 : i32
    %3 = arith.muli %arg0, %c256_i32 : i32
    %4 = tpu.iota {dimensions = array<i32: 0>} : vector<256x128xi32>
    %5 = vector.broadcast %3 : i32 to vector<256x128xi32>
    %6 = arith.addi %5, %4 : vector<256x128xi32>
    %c512_i32 = arith.constant 512 : i32
    %7 = vector.broadcast %c512_i32 : i32 to vector<256x128xi32>
    %8 = arith.cmpi slt, %6, %7 : vector<256x128xi32>
    %c256_i32_3 = arith.constant 256 : i32
    %9 = arith.muli %arg0, %c256_i32_3 : i32
    %c512_i32_4 = arith.constant 512 : i32
    %10 = arith.subi %c512_i32_4, %9 : i32
    %c256_i32_5 = arith.constant 256 : i32
    %11 = arith.minsi %c256_i32_5, %10 : i32
    %12 = arith.sitofp %11 : i32 to f32
    %cst_6 = arith.constant 0.000000e+00 : f32
    %13 = vector.broadcast %cst_6 : f32 to vector<256x128xf32>
    %14 = arith.select %8, %2, %13 : vector<256x128xi1>, vector<256x128xf32>
    %cst_7 = arith.constant dense<0.000000e+00> : vector<128xf32>
    %15 = vector.multi_reduction <add>, %14, %cst_7 [0] : vector<256x128xf32> to vector<128xf32>
    %16 = vector.shape_cast %15 : vector<128xf32> to vector<1x128xf32>
    %cst_8 = arith.constant 1.000000e+00 : f32
    %17 = arith.divf %cst_8, %12 : f32
    %18 = vector.broadcast %17 : f32 to vector<1x128xf32>
    %19 = arith.mulf %16, %18 : vector<1x128xf32>
    %20 = vector.broadcast %19 : vector<1x128xf32> to vector<256x128xf32>
    %21 = arith.subf %2, %20 : vector<256x128xf32>
    %cst_9 = arith.constant 0.000000e+00 : f32
    %22 = vector.broadcast %cst_9 : f32 to vector<256x128xf32>
    %23 = arith.select %8, %21, %22 : vector<256x128xi1>, vector<256x128xf32>
    %24 = arith.mulf %23, %23 : vector<256x128xf32>
    %cst_10 = arith.constant dense<0.000000e+00> : vector<128xf32>
    %25 = vector.multi_reduction <add>, %24, %cst_10 [0] : vector<256x128xf32> to vector<128xf32>
    %26 = vector.shape_cast %25 : vector<128xf32> to vector<1x128xf32>
    %27 = tpu.iota {dimensions = array<i32: 0>} : vector<8x128xi32>
    %c0_i32 = arith.constant 0 : i32
    %28 = vector.broadcast %c0_i32 : i32 to vector<8x128xi32>
    %29 = arith.cmpi eq, %27, %28 : vector<8x128xi32>
    %cst_11 = arith.constant 0.000000e+00 : f32
    %30 = vector.shape_cast %16 : vector<1x128xf32> to vector<1x128xf32>
    %31 = vector.broadcast %30 : vector<1x128xf32> to vector<8x128xf32>
    %32 = vector.broadcast %cst_11 : f32 to vector<8x128xf32>
    %33 = arith.select %29, %31, %32 : vector<8x128xi1>, vector<8x128xf32>
    %c1_i32 = arith.constant 1 : i32
    %34 = vector.broadcast %c1_i32 : i32 to vector<8x128xi32>
    %35 = arith.cmpi eq, %27, %34 : vector<8x128xi32>
    %cst_12 = arith.constant 0.000000e+00 : f32
    %36 = vector.shape_cast %26 : vector<1x128xf32> to vector<1x128xf32>
    %37 = vector.broadcast %36 : vector<1x128xf32> to vector<8x128xf32>
    %38 = vector.broadcast %cst_12 : f32 to vector<8x128xf32>
    %39 = arith.select %35, %37, %38 : vector<8x128xi1>, vector<8x128xf32>
    %40 = arith.addf %33, %39 : vector<8x128xf32>
    %c0_13 = arith.constant 0 : index
    %c0_14 = arith.constant 0 : index
    %41 = vector.load %arg3[%c0_13, %c0_14] : memref<8x128xf32, #tpu.memory_space<vmem>>, vector<8x128xf32>
    tpu.vector_store %arg3[%c0_13, %c0_14], %40 {strides = array<i32>} : memref<8x128xf32, #tpu.memory_space<vmem>>, vector<8x128xf32>,
    return
  }
  func.func @transform_0(%arg0: i32) -> (i32, i32) {
    %c0_i32 = arith.constant 0 : i32
    %c0_i32_0 = arith.constant 0 : i32
    return %arg0, %c0_i32 : i32, i32
  }
  func.func @transform_1(%arg0: i32) -> (i32, i32) {
    %c0_i32 = arith.constant 0 : i32
    %c0_i32_0 = arith.constant 0 : i32
    %c0_i32_1 = arith.constant 0 : i32
    return %c0_i32, %c0_i32_0 : i32, i32
  }
  func.func @transform_2(%arg0: i32) -> (i32, i32) {
    %c0_i32 = arith.constant 0 : i32
    %c0_i32_0 = arith.constant 0 : i32
    return %arg0, %c0_i32 : i32, i32
  }
}

</mosaic_0001>

<llo_original>
// kernel: tpu_custom_call.1
$region0: #{tpu_custom_call.1}
  #allocation0 [shape = 'u32[]', space=smem, size = 0x4, offset = 0x4, fixed_abs, tag = 'smem constant byte address 0x4 - core index']
  #allocation1 [shape = 'u32[144,128]{1,0:T(1,128)}', space=vmem, size = 0x12000, scoped, tag = 'internal scratch']
  %s0 = inlined_call_operand.vmem [shape: bf16[512,36], index: 0, kind: input, shape index: {}]
  %s1 = inlined_call_operand.vmem [shape: bf16[36,128], index: 1, kind: input, shape index: {}]
  %s2 = inlined_call_operand.hbm [shape: f32[16,128], index: 2, kind: output, shape index: {}]
  %s3 = sld [smem:[#allocation0]]
  $region41: #{tpu_custom_call.1} parent=0
    _
  %s5 = ssub.s32 1, %s3
  %s6 = scalar_select 0, %s5, %s3
  $region1: #{tpu_custom_call.1} parent=0
    #allocation2 [shape = 'u8[8192]{0}', space=vmem, size = 0x2000, scoped, tag = 'output window, operand 0']
    #allocation3 [shape = 's32[2]{0}', space=sflag, size = 0x8, scoped, tag = 'scoped memory for tpu_custom_call.1']
    %7 = vsyncpa [#allocation3], 0
    %s8 = scalar_lea.sflag [#allocation3], 1
    %9 = vsyncpa %s8, 0
    loop: start=0, step=1, limit=4
    $region2: #{tpu_custom_call.1} parent=1 // loop_pre_header
      _
    $region3: #{tpu_custom_call.1} parent=1 // loop_header
      %s11 = sphi 0, %s15
      %p12 = scmp.ge.s32.totalorder %s11, 4
      %s21 = sphi 0, %s23
      %s24 = sphi 0, %s21
      %s25 = sphi 0, %s24
      %s41 = sphi 0, %s25
      %s45 = sphi 0, %s45
      %s47 = sphi 0, %s45
      %s48 = sphi 0, %s47
      %s62 = sphi 0, %s48
      %s68 = sphi 0, %s70
      %s71 = sphi 0, %s68
      %s72 = sphi 0, %s71
      %s88 = sphi 0, %s72
    $region4: #{tpu_custom_call.1} parent=1 // loop_header_branch
      %14 = sbr.rel (%p12) target = $region8
    $region5: #{tpu_custom_call.1} parent=1 // loop_body
      %s16 = ssub.s32 %s11, 1
      %s17 = ssub.s32 %s11, 2
      %s18 = sadd.s32 %s11, 1
      %s19 = ssub.s32 %s11, %s18
      %p20 = scmp.eq.s32.totalorder %s19, 0
      %s22 = sadd.s32 %s21, 1
      %s23 = scalar_select %p20, %s21, %s22
      %p26 = pneg %p20
      %p27 = scmp.eq.s32.totalorder %s11, 1
      %p28 = por %p26, %p27
      %p29 = scmp.ne.s32.totalorder %s21, %s24
      %p30 = scmp.eq.s32.totalorder %s11, 0
      %p31 = por %p29, %p30
      %p32 = scmp.ne.s32.totalorder %s21, %s24
      %p33 = scmp.eq.s32.totalorder %s16, 1
      %p34 = por %p32, %p33
      %p35 = scmp.ne.s32.totalorder %s24, %s25
      %p36 = scmp.eq.s32.totalorder %s16, 0
      %p37 = por %p35, %p36
      %p38 = scmp.ne.s32.totalorder %s24, %s25
      %p39 = scmp.eq.s32.totalorder %s17, 1
      %p40 = por %p38, %p39
      %p42 = scmp.ne.s32.totalorder %s25, %s41
      %p43 = scmp.eq.s32.totalorder %s17, 0
      %p44 = por %p42, %p43
      %s46 = sadd.s32 %s45, 1
      %p49 = scmp.eq.s32.totalorder %s11, 1
      %p50 = scmp.ne.s32.totalorder %s45, %s47
      %p51 = scmp.eq.s32.totalorder %s11, 0
      %p52 = por %p50, %p51
      %p53 = scmp.ne.s32.totalorder %s45, %s47
      %p54 = scmp.eq.s32.totalorder %s16, 1
      %p55 = por %p53, %p54
      %p56 = scmp.ne.s32.totalorder %s47, %s48
      %p57 = scmp.eq.s32.totalorder %s16, 0
      %p58 = por %p56, %p57
      %p59 = scmp.ne.s32.totalorder %s47, %s48
      %p60 = scmp.eq.s32.totalorder %s17, 1
      %p61 = por %p59, %p60
      %p63 = scmp.ne.s32.totalorder %s48, %s62
      %p64 = scmp.eq.s32.totalorder %s17, 0
      %p65 = por %p63, %p64
      %s66 = ssub.s32 %s11, %s18
      %p67 = scmp.eq.s32.totalorder %s66, 0
      %s69 = sadd.s32 %s68, 1
      %s70 = scalar_select %p67, %s68, %s69
      %p73 = pneg %p67
      %p74 = scmp.eq.s32.totalorder %s11, 1
      %p75 = por %p73, %p74
      %p76 = scmp.ne.s32.totalorder %s68, %s71
      %p77 = scmp.eq.s32.totalorder %s11, 0
      %p78 = por %p76, %p77
      %p79 = scmp.ne.s32.totalorder %s68, %s71
      %p80 = scmp.eq.s32.totalorder %s16, 1
      %p81 = por %p79, %p80
      %p82 = scmp.ne.s32.totalorder %s71, %s72
      %p83 = scmp.eq.s32.totalorder %s16, 0
      %p84 = por %p82, %p83
      %p85 = scmp.ne.s32.totalorder %s71, %s72
      %p86 = scmp.eq.s32.totalorder %s17, 1
      %p87 = por %p85, %p86
      %p89 = scmp.ne.s32.totalorder %s72, %s88
      %p90 = scmp.eq.s32.totalorder %s17, 0
      %p91 = por %p89, %p90
      %p92 = scmp.le.s32.totalorder 1, %s11
      %p93 = scmp.lt.s32.totalorder %s11, 3
      %p94 = pnand %p92, %p93
      %p95 = pneg %p94
      // Predicated region
      $region9: #{tpu_custom_call.1} parent=5 // pred_check
        _
      $region10: #{tpu_custom_call.1} parent=5 // pred_check_branch
        %97 = sbr.rel (%p94) target = $region12
      $region11: #{tpu_custom_call.1} parent=5 // pred_region
        %s98 = ssub.s32 %s11, 1
        // Predicated region
        $region13: #{tpu_custom_call.1} parent=11 // pred_check
          %p99 = pneg %p58
        $region14: #{tpu_custom_call.1} parent=11 // pred_check_branch
          %101 = sbr.rel (%p99) target = $region16
        $region15: #{tpu_custom_call.1} parent=11 // pred_region
          _
        $region16: #{tpu_custom_call.1} parent=11 // pred_fallthru
          _
      $region12: #{tpu_custom_call.1} parent=5 // pred_fallthru
        _
      %p102 = scmp.lt.s32.totalorder %s11, 2
      // Predicated region
      $region17: #{tpu_custom_call.1} parent=5 // pred_check
        %p103 = pneg %p102
      $region18: #{tpu_custom_call.1} parent=5 // pred_check_branch
        %105 = sbr.rel (%p103) target = $region20
      $region19: #{tpu_custom_call.1} parent=5 // pred_region
        // Predicated region
        $region21: #{tpu_custom_call.1} parent=19 // pred_check
          %p106 = pneg %p31
        $region22: #{tpu_custom_call.1} parent=19 // pred_check_branch
          %108 = sbr.rel (%p106) target = $region24
        $region23: #{tpu_custom_call.1} parent=19 // pred_region
          %s109 = smul.u32 32, %s11
          %p110 = scmp.lt.s32.totalorder %s109, 63
          %s111 = scalar_select %p110, %s109, 63
          %s112 = smul.addr %s111, 4
          %s113 = scalar_lea.vmem %s0, %s112
          %s114 = smul.u32 32, %s11
        $region24: #{tpu_custom_call.1} parent=19 // pred_fallthru
          _
      $region20: #{tpu_custom_call.1} parent=5 // pred_fallthru
        _
      %p115 = scmp.le.s32.totalorder 1, %s11
      %p116 = scmp.lt.s32.totalorder %s11, 3
      %p117 = pnand %p115, %p116
      %p118 = pneg %p117
      // Predicated region
      $region25: #{tpu_custom_call.1} parent=5 // pred_check
        _
      $region26: #{tpu_custom_call.1} parent=5 // pred_check_branch
        %120 = sbr.rel (%p117) target = $region28
      $region27: #{tpu_custom_call.1} parent=5 // pred_region
        %s121 = ssub.s32 %s11, 1
        %s122 = smul.u32 32, %s16
        %p123 = scmp.lt.s32.totalorder %s122, 63
        %s124 = scalar_select %p123, %s122, 63
        %s125 = smul.addr %s124, 4
        %s126 = scalar_lea.vmem %s0, %s125
        %p127 = pneg %p37
        %p128 = pneg %p34
        %p129 = pneg %p58
        %p130 = pneg %p55
        %p131 = pneg %p84
        %p132 = pneg %p81
        %s133 = sand.u32 %s71, 1
        %s134 = scalar_lea.sflag [#allocation3], %s133
        %s135 = sand.u32 %s71, 1
        %s136 = smul.addr %s135, 8
        %s137 = scalar_lea.vmem [#allocation2], %s136
        %s138 = smul.u32 32, %s16
        %p139 = scmp.lt.s32.totalorder %s138, 63
        %s140 = scalar_select %p139, %s138, 63
        %s141 = smul.addr %s140, 4
        %s142 = scalar_lea.vmem %s0, %s141
        %s143 = smul.u32 32, %s16
        %v145 = vld [vmem:[%s142] sm:$0xf]
        %v146 = vld [vmem:[%s142 + $0x4] sm:$0xf]
        %v147 = vld [vmem:[%s142 + $0x8] sm:$0xf]
        %v148 = vld [vmem:[%s142 + $0xc] sm:$0xf]
        %v149 = vld [vmem:[%s142 + $0x10] sm:$0xf]
        %v150 = vld [vmem:[%s142 + $0x14] sm:$0xf]
        %v151 = vld [vmem:[%s142 + $0x18] sm:$0xf]
        %v152 = vld [vmem:[%s142 + $0x1c] sm:$0xf]
        %v153 = vld [vmem:[%s142 + $0x20] sm:$0xf]
        %v154 = vld [vmem:[%s142 + $0x24] sm:$0xf]
        %v155 = vld [vmem:[%s142 + $0x28] sm:$0xf]
        %v156 = vld [vmem:[%s142 + $0x2c] sm:$0xf]
        %v157 = vld [vmem:[%s142 + $0x30] sm:$0xf]
        %v158 = vld [vmem:[%s142 + $0x34] sm:$0xf]
        %v159 = vld [vmem:[%s142 + $0x38] sm:$0xf]
        %v160 = vld [vmem:[%s142 + $0x3c] sm:$0xf]
        %v161 = vld [vmem:[%s142 + $0x40] sm:$0xf]
        %v162 = vld [vmem:[%s142 + $0x44] sm:$0xf]
        %v163 = vld [vmem:[%s142 + $0x48] sm:$0xf]
        %v164 = vld [vmem:[%s142 + $0x4c] sm:$0xf]
        %v165 = vld [vmem:[%s142 + $0x50] sm:$0xf]
        %v166 = vld [vmem:[%s142 + $0x54] sm:$0xf]
        %v167 = vld [vmem:[%s142 + $0x58] sm:$0xf]
        %v168 = vld [vmem:[%s142 + $0x5c] sm:$0xf]
        %v169 = vld [vmem:[%s142 + $0x60] sm:$0xf]
        %v170 = vld [vmem:[%s142 + $0x64] sm:$0xf]
        %v171 = vld [vmem:[%s142 + $0x68] sm:$0xf]
        %v172 = vld [vmem:[%s142 + $0x6c] sm:$0xf]
        %v173 = vld [vmem:[%s142 + $0x70] sm:$0xf]
        %v174 = vld [vmem:[%s142 + $0x74] sm:$0xf]
        %v175 = vld [vmem:[%s142 + $0x78] sm:$0xf]
        %v176 = vld [vmem:[%s142 + $0x7c] sm:$0xf]
        %v177 = vld [vmem:[%s1] sm:$0xf]
        %v178 = vld [vmem:[%s1 + $0x4] sm:$0xf]
        %v179 = vld [vmem:[%s1 + $0x8] sm:$0xf]
        %v180 = vld [vmem:[%s1 + $0xc] sm:$0xf]
        %v181 = vld [vmem:[%s1 + $0x10] sm:$0x3]
        %v214 = vunpack.c.l.b16 %v145
        %v215 = vunpack.c.l.b16 %v146
        %v216 = vunpack.c.l.b16 %v147
        %v217 = vunpack.c.l.b16 %v148
        %v218 = vunpack.c.l.b16 %v149
        %v219 = vunpack.c.l.b16 %v150
        %v220 = vunpack.c.l.b16 %v151
        %v221 = vunpack.c.l.b16 %v152
        %v222 = vunpack.c.l.b16 %v153
        %v223 = vunpack.c.l.b16 %v154
        %v224 = vunpack.c.l.b16 %v155
        %v225 = vunpack.c.l.b16 %v156
        %v226 = vunpack.c.l.b16 %v157
        %v227 = vunpack.c.l.b16 %v158
        %v228 = vunpack.c.l.b16 %v159
        %v229 = vunpack.c.l.b16 %v160
        %v230 = vunpack.c.l.b16 %v161
        %v231 = vunpack.c.l.b16 %v162
        %v232 = vunpack.c.l.b16 %v163
        %v233 = vunpack.c.l.b16 %v164
        %v234 = vunpack.c.l.b16 %v165
        %v235 = vunpack.c.l.b16 %v166
        %v236 = vunpack.c.l.b16 %v167
        %v237 = vunpack.c.l.b16 %v168
        %v238 = vunpack.c.l.b16 %v169
        %v239 = vunpack.c.l.b16 %v170
        %v240 = vunpack.c.l.b16 %v171
        %v241 = vunpack.c.l.b16 %v172
        %v242 = vunpack.c.l.b16 %v173
        %v243 = vunpack.c.l.b16 %v174
        %v244 = vunpack.c.l.b16 %v175
        %v245 = vunpack.c.l.b16 %v176
        %v246 = vpack.c.b16 %v215, %v214
        %v247 = vpack.c.b16 %v217, %v216
        %v248 = vpack.c.b16 %v219, %v218
        %v249 = vpack.c.b16 %v221, %v220
        %v250 = vpack.c.b16 %v223, %v222
        %v251 = vpack.c.b16 %v225, %v224
        %v252 = vpack.c.b16 %v227, %v226
        %v253 = vpack.c.b16 %v229, %v228
        %v254 = vpack.c.b16 %v231, %v230
        %v255 = vpack.c.b16 %v233, %v232
        %v256 = vpack.c.b16 %v235, %v234
        %v257 = vpack.c.b16 %v237, %v236
        %v258 = vpack.c.b16 %v239, %v238
        %v259 = vpack.c.b16 %v241, %v240
        %v260 = vpack.c.b16 %v243, %v242
        %v261 = vpack.c.b16 %v245, %v244
        %v267 = vunpack.c.l.b16 %v177
        %v268 = vunpack.c.l.b16 %v178
        %v269 = vunpack.c.l.b16 %v179
        %v270 = vunpack.c.l.b16 %v180
        %v271 = vunpack.c.l.b16 %v181
        %v272 = vpack.c.b16 %v268, %v267
        %v273 = vpack.c.b16 %v270, %v269
        %v274 = vpack.c.b16 %v271, %v271
        %vm277 = vcmask 293888
        %v279 = vsel %vm277, %v246, 0
        %v282 = vsel %vm277, %v247, 0
        %v285 = vsel %vm277, %v248, 0
        %v288 = vsel %vm277, %v249, 0
        %v291 = vsel %vm277, %v250, 0
        %v294 = vsel %vm277, %v251, 0
        %v297 = vsel %vm277, %v252, 0
        %v300 = vsel %vm277, %v253, 0
        %v303 = vsel %vm277, %v254, 0
        %v306 = vsel %vm277, %v255, 0
        %v309 = vsel %vm277, %v256, 0
        %v312 = vsel %vm277, %v257, 0
        %v315 = vsel %vm277, %v258, 0
        %v318 = vsel %vm277, %v259, 0
        %v321 = vsel %vm277, %v260, 0
        %v324 = vsel %vm277, %v261, 0
        %vm326 = vcmask 1041408
        %v328 = vsel %vm326, %v274, 0
        %330 = vmatprep.subr.bf16.mxu0 0
        %331 = vmatpush1.bf16.msra.mxu0 0
        %332 = vmatprep.subr.bf16.mxu0 0
        %333 = vmatpush1.bf16.msra.mxu0 0
        %334 = vmatprep.subr.bf16.mxu0 0
        %335 = vmatpush1.bf16.msra.mxu0 0
        %336 = vmatprep.subr.bf16.mxu0 0
        %337 = vmatpush1.bf16.msra.mxu0 0
        %338 = vmatprep.subr.bf16.mxu0 0
        %339 = vmatpush1.bf16.msra.mxu0 0
        %340 = vmatprep.subr.bf16.mxu0 0
        %341 = vmatpush1.bf16.msra.mxu0 %v328
        %342 = vmatprep.subr.bf16.mxu0 0
        %343 = vmatpush1.bf16.msra.mxu0 %v273
        %344 = vmatprep.subr.bf16.mxu0 0
        %345 = vmatpush1.bf16.msra.mxu0 %v272
        %346 = vmatprep.subr.bf16.mxu0 0
        %347 = vmatpush2.bf16.msra.mxu0 0
        %348 = vmatprep.subr.bf16.mxu0 0
        %349 = vmatpush2.bf16.msra.mxu0 0
        %350 = vmatprep.subr.bf16.mxu0 0
        %351 = vmatpush2.bf16.msra.mxu0 0
        %352 = vmatprep.subr.bf16.mxu0 0
        %353 = vmatpush2.bf16.msra.mxu0 0
        %354 = vmatprep.subr.bf16.mxu0 0
        %355 = vmatpush2.bf16.msra.mxu0 0
        %356 = vmatprep.subr.bf16.mxu0 0
        %357 = vmatpush2.bf16.msra.mxu0 0
        %358 = vmatprep.subr.bf16.mxu0 0
        %359 = vmatpush2.bf16.msra.mxu0 0
        %360 = vmatprep.subr.bf16.mxu0 0
        %361 = vmatpush2.bf16.msra.mxu0 0
        %362 = vmatprep.mubr.bf16.mxu0 0
        %363 = vmatmul.mubr.bf16.gmra.mxu0 %v279
        %v364 = vpop.f32.mrf.mxu0
        %v365 = vadd.f32 0.0, %v364
        %v366 = vpop.f32.mrf.mxu0
        %v367 = vpop.f32.mrf.mxu0
        %v368 = vadd.f32 0.0, %v367
        %v369 = vpop.f32.mrf.mxu0
        %370 = vmatprep.mubr.bf16.mxu0 0
        %371 = vmatmul.mubr.bf16.gmra.mxu0 %v282
        %v372 = vpop.f32.mrf.mxu0
        %v373 = vadd.f32 0.0, %v372
        %v374 = vpop.f32.mrf.mxu0
        %v375 = vpop.f32.mrf.mxu0
        %v376 = vadd.f32 0.0, %v375
        %v377 = vpop.f32.mrf.mxu0
        %378 = vmatprep.mubr.bf16.mxu0 0
        %379 = vmatmul.mubr.bf16.gmra.mxu0 %v285
        %v380 = vpop.f32.mrf.mxu0
        %v381 = vadd.f32 0.0, %v380
        %v382 = vpop.f32.mrf.mxu0
        %v383 = vpop.f32.mrf.mxu0
        %v384 = vadd.f32 0.0, %v383
        %v385 = vpop.f32.mrf.mxu0
        %386 = vmatprep.mubr.bf16.mxu0 0
        %387 = vmatmul.mubr.bf16.gmra.mxu0 %v288
        %v388 = vpop.f32.mrf.mxu0
        %v389 = vadd.f32 0.0, %v388
        %v390 = vpop.f32.mrf.mxu0
        %v391 = vpop.f32.mrf.mxu0
        %v392 = vadd.f32 0.0, %v391
        %v393 = vpop.f32.mrf.mxu0
        %394 = vmatprep.mubr.bf16.mxu0 0
        %395 = vmatmul.mubr.bf16.gmra.mxu0 %v291
        %v396 = vpop.f32.mrf.mxu0
        %v397 = vadd.f32 0.0, %v396
        %v398 = vpop.f32.mrf.mxu0
        %v399 = vpop.f32.mrf.mxu0
        %v400 = vadd.f32 0.0, %v399
        %v401 = vpop.f32.mrf.mxu0
        %402 = vmatprep.mubr.bf16.mxu0 0
        %403 = vmatmul.mubr.bf16.gmra.mxu0 %v294
        %v404 = vpop.f32.mrf.mxu0
        %v405 = vadd.f32 0.0, %v404
        %v406 = vpop.f32.mrf.mxu0
        %v407 = vpop.f32.mrf.mxu0
        %v408 = vadd.f32 0.0, %v407
        %v409 = vpop.f32.mrf.mxu0
        %410 = vmatprep.mubr.bf16.mxu0 0
        %411 = vmatmul.mubr.bf16.gmra.mxu0 %v297
        %v412 = vpop.f32.mrf.mxu0
        %v413 = vadd.f32 0.0, %v412
        %v414 = vpop.f32.mrf.mxu0
        %v415 = vpop.f32.mrf.mxu0
        %v416 = vadd.f32 0.0, %v415
        %v417 = vpop.f32.mrf.mxu0
        %418 = vmatprep.mubr.bf16.mxu0 0
        %419 = vmatmul.mubr.bf16.gmra.mxu0 %v300
        %v420 = vpop.f32.mrf.mxu0
        %v421 = vadd.f32 0.0, %v420
        %v422 = vpop.f32.mrf.mxu0
        %v423 = vpop.f32.mrf.mxu0
        %v424 = vadd.f32 0.0, %v423
        %v425 = vpop.f32.mrf.mxu0
        %426 = vmatprep.mubr.bf16.mxu0 0
        %427 = vmatmul.mubr.bf16.gmra.mxu0 %v303
        %v428 = vpop.f32.mrf.mxu0
        %v429 = vadd.f32 0.0, %v428
        %v430 = vpop.f32.mrf.mxu0
        %v431 = vpop.f32.mrf.mxu0
        %v432 = vadd.f32 0.0, %v431
        %v433 = vpop.f32.mrf.mxu0
        %434 = vmatprep.mubr.bf16.mxu0 0
        %435 = vmatmul.mubr.bf16.gmra.mxu0 %v306
        %v436 = vpop.f32.mrf.mxu0
        %v437 = vadd.f32 0.0, %v436
        %v438 = vpop.f32.mrf.mxu0
        %v439 = vpop.f32.mrf.mxu0
        %v440 = vadd.f32 0.0, %v439
        %v441 = vpop.f32.mrf.mxu0
        %442 = vmatprep.mubr.bf16.mxu0 0
        %443 = vmatmul.mubr.bf16.gmra.mxu0 %v309
        %v444 = vpop.f32.mrf.mxu0
        %v445 = vadd.f32 0.0, %v444
        %v446 = vpop.f32.mrf.mxu0
        %v447 = vpop.f32.mrf.mxu0
        %v448 = vadd.f32 0.0, %v447
        %v449 = vpop.f32.mrf.mxu0
        %450 = vmatprep.mubr.bf16.mxu0 0
        %451 = vmatmul.mubr.bf16.gmra.mxu0 %v312
        %v452 = vpop.f32.mrf.mxu0
        %v453 = vadd.f32 0.0, %v452
        %v454 = vpop.f32.mrf.mxu0
        %v455 = vpop.f32.mrf.mxu0
        %v456 = vadd.f32 0.0, %v455
        %v457 = vpop.f32.mrf.mxu0
        %458 = vmatprep.mubr.bf16.mxu0 0
        %459 = vmatmul.mubr.bf16.gmra.mxu0 %v315
        %v460 = vpop.f32.mrf.mxu0
        %v461 = vadd.f32 0.0, %v460
        %v462 = vpop.f32.mrf.mxu0
        %v463 = vpop.f32.mrf.mxu0
        %v464 = vadd.f32 0.0, %v463
        %v465 = vpop.f32.mrf.mxu0
        %466 = vmatprep.mubr.bf16.mxu0 0
        %467 = vmatmul.mubr.bf16.gmra.mxu0 %v318
        %v468 = vpop.f32.mrf.mxu0
        %v469 = vadd.f32 0.0, %v468
        %v470 = vpop.f32.mrf.mxu0
        %v471 = vpop.f32.mrf.mxu0
        %v472 = vadd.f32 0.0, %v471
        %v473 = vpop.f32.mrf.mxu0
        %474 = vmatprep.mubr.bf16.mxu0 0
        %475 = vmatmul.mubr.bf16.gmra.mxu0 %v321
        %v476 = vpop.f32.mrf.mxu0
        %v477 = vadd.f32 0.0, %v476
        %v478 = vpop.f32.mrf.mxu0
        %v479 = vpop.f32.mrf.mxu0
        %v480 = vadd.f32 0.0, %v479
        %v481 = vpop.f32.mrf.mxu0
        %482 = vmatprep.mubr.bf16.mxu0 0
        %483 = vmatmul.mubr.bf16.gmra.mxu0 %v324
        %v484 = vpop.f32.mrf.mxu0
        %v485 = vadd.f32 0.0, %v484
        %v486 = vpop.f32.mrf.mxu0
        %v487 = vpop.f32.mrf.mxu0
        %v488 = vadd.f32 0.0, %v487
        %v489 = vpop.f32.mrf.mxu0
        %490 = vdwg.mxu0
        %s491 = smul.u32 %s16, 256
        %v492 = vlaneseq
        %v493 = vshrl.u32 %v492, 7
        %v494 = vadd.s32 %v493, 8
        %v495 = vadd.s32 %v493, 16
        %v496 = vadd.s32 %v493, 24
        %v497 = vadd.s32 %v493, 32
        %v498 = vadd.s32 %v493, 40
        %v499 = vadd.s32 %v493, 48
        %v500 = vadd.s32 %v493, 56
        %v501 = vadd.s32 %v493, 64
        %v502 = vadd.s32 %v493, 72
        %v503 = vadd.s32 %v493, 80
        %v504 = vadd.s32 %v493, 88
        %v505 = vadd.s32 %v493, 96
        %v506 = vadd.s32 %v493, 104
        %v507 = vadd.s32 %v493, 112
        %v508 = vadd.s32 %v493, 120
        %v509 = vadd.s32 %v493, 128
        %v510 = vadd.s32 %v493, 136
        %v511 = vadd.s32 %v493, 144
        %v512 = vadd.s32 %v493, 152
        %v513 = vadd.s32 %v493, 160
        %v514 = vadd.s32 %v493, 168
        %v515 = vadd.s32 %v493, 176
        %v516 = vadd.s32 %v493, 184
        %v517 = vadd.s32 %v493, 192
        %v518 = vadd.s32 %v493, 200
        %v519 = vadd.s32 %v493, 208
        %v520 = vadd.s32 %v493, 216
        %v521 = vadd.s32 %v493, 224
        %v522 = vadd.s32 %v493, 232
        %v523 = vadd.s32 %v493, 240
        %v524 = vadd.s32 %v493, 248
        %v525 = vstv %s491
        %v526 = vadd.s32 %v525, %v493
        %v527 = vadd.s32 %v525, %v494
        %v528 = vadd.s32 %v525, %v495
        %v529 = vadd.s32 %v525, %v496
        %v530 = vadd.s32 %v525, %v497
        %v531 = vadd.s32 %v525, %v498
        %v532 = vadd.s32 %v525, %v499
        %v533 = vadd.s32 %v525, %v500
        %v534 = vadd.s32 %v525, %v501
        %v535 = vadd.s32 %v525, %v502
        %v536 = vadd.s32 %v525, %v503
        %v537 = vadd.s32 %v525, %v504
        %v538 = vadd.s32 %v525, %v505
        %v539 = vadd.s32 %v525, %v506
        %v540 = vadd.s32 %v525, %v507
        %v541 = vadd.s32 %v525, %v508
        %v542 = vadd.s32 %v525, %v509
        %v543 = vadd.s32 %v525, %v510
        %v544 = vadd.s32 %v525, %v511
        %v545 = vadd.s32 %v525, %v512
        %v546 = vadd.s32 %v525, %v513
        %v547 = vadd.s32 %v525, %v514
        %v548 = vadd.s32 %v525, %v515
        %v549 = vadd.s32 %v525, %v516
        %v550 = vadd.s32 %v525, %v517
        %v551 = vadd.s32 %v525, %v518
        %v552 = vadd.s32 %v525, %v519
        %v553 = vadd.s32 %v525, %v520
        %v554 = vadd.s32 %v525, %v521
        %v555 = vadd.s32 %v525, %v522
        %v556 = vadd.s32 %v525, %v523
        %v557 = vadd.s32 %v525, %v524
        %vm558 = vcmp.lt.s32.totalorder %v526, 512
        %vm559 = vcmp.lt.s32.totalorder %v527, 512
        %vm560 = vcmp.lt.s32.totalorder %v528, 512
        %vm561 = vcmp.lt.s32.totalorder %v529, 512
        %vm562 = vcmp.lt.s32.totalorder %v530, 512
        %vm563 = vcmp.lt.s32.totalorder %v531, 512
        %vm564 = vcmp.lt.s32.totalorder %v532, 512
        %vm565 = vcmp.lt.s32.totalorder %v533, 512
        %vm566 = vcmp.lt.s32.totalorder %v534, 512
        %vm567 = vcmp.lt.s32.totalorder %v535, 512
        %vm568 = vcmp.lt.s32.totalorder %v536, 512
        %vm569 = vcmp.lt.s32.totalorder %v537, 512
        %vm570 = vcmp.lt.s32.totalorder %v538, 512
        %vm571 = vcmp.lt.s32.totalorder %v539, 512
        %vm572 = vcmp.lt.s32.totalorder %v540, 512
        %vm573 = vcmp.lt.s32.totalorder %v541, 512
        %vm574 = vcmp.lt.s32.totalorder %v542, 512
        %vm575 = vcmp.lt.s32.totalorder %v543, 512
        %vm576 = vcmp.lt.s32.totalorder %v544, 512
        %vm577 = vcmp.lt.s32.totalorder %v545, 512
        %vm578 = vcmp.lt.s32.totalorder %v546, 512
        %vm579 = vcmp.lt.s32.totalorder %v547, 512
        %vm580 = vcmp.lt.s32.totalorder %v548, 512
        %vm581 = vcmp.lt.s32.totalorder %v549, 512
        %vm582 = vcmp.lt.s32.totalorder %v550, 512
        %vm583 = vcmp.lt.s32.totalorder %v551, 512
        %vm584 = vcmp.lt.s32.totalorder %v552, 512
        %vm585 = vcmp.lt.s32.totalorder %v553, 512
        %vm586 = vcmp.lt.s32.totalorder %v554, 512
        %vm587 = vcmp.lt.s32.totalorder %v555, 512
        %vm588 = vcmp.lt.s32.totalorder %v556, 512
        %vm589 = vcmp.lt.s32.totalorder %v557, 512
        %s590 = ssub.s32 512, %s491
        %p591 = scmp.lt.s32.totalorder %s590, 256
        %s592 = scalar_select %p591, %s590, 256
        %s593 = scvt.s32.f32 %s592
        %v594 = vsel %vm558, %v365, 0.0
        %v595 = vsel %vm559, %v368, 0.0
        %v596 = vsel %vm560, %v373, 0.0
        %v597 = vsel %vm561, %v376, 0.0
        %v598 = vsel %vm562, %v381, 0.0
        %v599 = vsel %vm563, %v384, 0.0
        %v600 = vsel %vm564, %v389, 0.0
        %v601 = vsel %vm565, %v392, 0.0
        %v602 = vsel %vm566, %v397, 0.0
        %v603 = vsel %vm567, %v400, 0.0
        %v604 = vsel %vm568, %v405, 0.0
        %v605 = vsel %vm569, %v408, 0.0
        %v606 = vsel %vm570, %v413, 0.0
        %v607 = vsel %vm571, %v416, 0.0
        %v608 = vsel %vm572, %v421, 0.0
        %v609 = vsel %vm573, %v424, 0.0
        %v610 = vsel %vm574, %v429, 0.0
        %v611 = vsel %vm575, %v432, 0.0
        %v612 = vsel %vm576, %v437, 0.0
        %v613 = vsel %vm577, %v440, 0.0
        %v614 = vsel %vm578, %v445, 0.0
        %v615 = vsel %vm579, %v448, 0.0
        %v616 = vsel %vm580, %v453, 0.0
        %v617 = vsel %vm581, %v456, 0.0
        %v618 = vsel %vm582, %v461, 0.0
        %v619 = vsel %vm583, %v464, 0.0
        %v620 = vsel %vm584, %v469, 0.0
        %v621 = vsel %vm585, %v472, 0.0
        %v622 = vsel %vm586, %v477, 0.0
        %v623 = vsel %vm587, %v480, 0.0
        %v624 = vsel %vm588, %v485, 0.0
        %v625 = vsel %vm589, %v488, 0.0
        %v626 = vadd.f32 %v594, %v595
        %v627 = vadd.f32 %v626, %v596
        %v628 = vadd.f32 %v627, %v597
        %v629 = vadd.f32 %v628, %v598
        %v630 = vadd.f32 %v629, %v599
        %v631 = vadd.f32 %v630, %v600
        %v632 = vadd.f32 %v631, %v601
        %v633 = vadd.f32 %v632, %v602
        %v634 = vadd.f32 %v633, %v603
        %v635 = vadd.f32 %v634, %v604
        %v636 = vadd.f32 %v635, %v605
        %v637 = vadd.f32 %v636, %v606
        %v638 = vadd.f32 %v637, %v607
        %v639 = vadd.f32 %v638, %v608
        %v640 = vadd.f32 %v639, %v609
        %v641 = vadd.f32 %v640, %v610
        %v642 = vadd.f32 %v641, %v611
        %v643 = vadd.f32 %v642, %v612
        %v644 = vadd.f32 %v643, %v613
        %v645 = vadd.f32 %v644, %v614
        %v646 = vadd.f32 %v645, %v615
        %v647 = vadd.f32 %v646, %v616
        %v648 = vadd.f32 %v647, %v617
        %v649 = vadd.f32 %v648, %v618
        %v650 = vadd.f32 %v649, %v619
        %v651 = vadd.f32 %v650, %v620
        %v652 = vadd.f32 %v651, %v621
        %v653 = vadd.f32 %v652, %v622
        %v654 = vadd.f32 %v653, %v623
        %v655 = vadd.f32 %v654, %v624
        %v656 = vadd.f32 %v655, %v625
        %v657 = vrot.slane %v656, 4
        %v658 = vadd.f32 %v656, %v657
        %v659 = vrot.slane %v658, 2
        %v660 = vadd.f32 %v658, %v659
        %v661 = vrot.slane %v660, 1
        %v662 = vadd.f32 %v660, %v661
        %v663 = vstv %s593
        %v664 = vrcp.pop %v663
        %s665 = vtos %v664
        %v666 = vstv %s665
        %v667 = vmul.f32 %v662, %v666
        %v668 = vsub.f32 %v365, %v667
        %v669 = vsub.f32 %v368, %v667
        %v670 = vsub.f32 %v373, %v667
        %v671 = vsub.f32 %v376, %v667
        %v672 = vsub.f32 %v381, %v667
        %v673 = vsub.f32 %v384, %v667
        %v674 = vsub.f32 %v389, %v667
        %v675 = vsub.f32 %v392, %v667
        %v676 = vsub.f32 %v397, %v667
        %v677 = vsub.f32 %v400, %v667
        %v678 = vsub.f32 %v405, %v667
        %v679 = vsub.f32 %v408, %v667
        %v680 = vsub.f32 %v413, %v667
        %v681 = vsub.f32 %v416, %v667
        %v682 = vsub.f32 %v421, %v667
        %v683 = vsub.f32 %v424, %v667
        %v684 = vsub.f32 %v429, %v667
        %v685 = vsub.f32 %v432, %v667
        %v686 = vsub.f32 %v437, %v667
        %v687 = vsub.f32 %v440, %v667
        %v688 = vsub.f32 %v445, %v667
        %v689 = vsub.f32 %v448, %v667
        %v690 = vsub.f32 %v453, %v667
        %v691 = vsub.f32 %v456, %v667
        %v692 = vsub.f32 %v461, %v667
        %v693 = vsub.f32 %v464, %v667
        %v694 = vsub.f32 %v469, %v667
        %v695 = vsub.f32 %v472, %v667
        %v696 = vsub.f32 %v477, %v667
        %v697 = vsub.f32 %v480, %v667
        %v698 = vsub.f32 %v485, %v667
        %v699 = vsub.f32 %v488, %v667
        %v700 = vsel %vm558, %v668, 0.0
        %v701 = vsel %vm559, %v669, 0.0
        %v702 = vsel %vm560, %v670, 0.0
        %v703 = vsel %vm561, %v671, 0.0
        %v704 = vsel %vm562, %v672, 0.0
        %v705 = vsel %vm563, %v673, 0.0
        %v706 = vsel %vm564, %v674, 0.0
        %v707 = vsel %vm565, %v675, 0.0
        %v708 = vsel %vm566, %v676, 0.0
        %v709 = vsel %vm567, %v677, 0.0
        %v710 = vsel %vm568, %v678, 0.0
        %v711 = vsel %vm569, %v679, 0.0
        %v712 = vsel %vm570, %v680, 0.0
        %v713 = vsel %vm571, %v681, 0.0
        %v714 = vsel %vm572, %v682, 0.0
        %v715 = vsel %vm573, %v683, 0.0
        %v716 = vsel %vm574, %v684, 0.0
        %v717 = vsel %vm575, %v685, 0.0
        %v718 = vsel %vm576, %v686, 0.0
        %v719 = vsel %vm577, %v687, 0.0
        %v720 = vsel %vm578, %v688, 0.0
        %v721 = vsel %vm579, %v689, 0.0
        %v722 = vsel %vm580, %v690, 0.0
        %v723 = vsel %vm581, %v691, 0.0
        %v724 = vsel %vm582, %v692, 0.0
        %v725 = vsel %vm583, %v693, 0.0
        %v726 = vsel %vm584, %v694, 0.0
        %v727 = vsel %vm585, %v695, 0.0
        %v728 = vsel %vm586, %v696, 0.0
        %v729 = vsel %vm587, %v697, 0.0
        %v730 = vsel %vm588, %v698, 0.0
        %v731 = vsel %vm589, %v699, 0.0
        %v732 = vmul.f32 %v700, %v700
        %v733 = vmul.f32 %v701, %v701
        %v734 = vmul.f32 %v702, %v702
        %v735 = vmul.f32 %v703, %v703
        %v736 = vmul.f32 %v704, %v704
        %v737 = vmul.f32 %v705, %v705
        %v738 = vmul.f32 %v706, %v706
        %v739 = vmul.f32 %v707, %v707
        %v740 = vmul.f32 %v708, %v708
        %v741 = vmul.f32 %v709, %v709
        %v742 = vmul.f32 %v710, %v710
        %v743 = vmul.f32 %v711, %v711
        %v744 = vmul.f32 %v712, %v712
        %v745 = vmul.f32 %v713, %v713
        %v746 = vmul.f32 %v714, %v714
        %v747 = vmul.f32 %v715, %v715
        %v748 = vmul.f32 %v716, %v716
        %v749 = vmul.f32 %v717, %v717
        %v750 = vmul.f32 %v718, %v718
        %v751 = vmul.f32 %v719, %v719
        %v752 = vmul.f32 %v720, %v720
        %v753 = vmul.f32 %v721, %v721
        %v754 = vmul.f32 %v722, %v722
        %v755 = vmul.f32 %v723, %v723
        %v756 = vmul.f32 %v724, %v724
        %v757 = vmul.f32 %v725, %v725
        %v758 = vmul.f32 %v726, %v726
        %v759 = vmul.f32 %v727, %v727
        %v760 = vmul.f32 %v728, %v728
        %v761 = vmul.f32 %v729, %v729
        %v762 = vmul.f32 %v730, %v730
        %v763 = vmul.f32 %v731, %v731
        %v764 = vadd.f32 %v732, %v733
        %v765 = vadd.f32 %v764, %v734
        %v766 = vadd.f32 %v765, %v735
        %v767 = vadd.f32 %v766, %v736
        %v768 = vadd.f32 %v767, %v737
        %v769 = vadd.f32 %v768, %v738
        %v770 = vadd.f32 %v769, %v739
        %v771 = vadd.f32 %v770, %v740
        %v772 = vadd.f32 %v771, %v741
        %v773 = vadd.f32 %v772, %v742
        %v774 = vadd.f32 %v773, %v743
        %v775 = vadd.f32 %v774, %v744
        %v776 = vadd.f32 %v775, %v745
        %v777 = vadd.f32 %v776, %v746
        %v778 = vadd.f32 %v777, %v747
        %v779 = vadd.f32 %v778, %v748
        %v780 = vadd.f32 %v779, %v749
        %v781 = vadd.f32 %v780, %v750
        %v782 = vadd.f32 %v781, %v751
        %v783 = vadd.f32 %v782, %v752
        %v784 = vadd.f32 %v783, %v753
        %v785 = vadd.f32 %v784, %v754
        %v786 = vadd.f32 %v785, %v755
        %v787 = vadd.f32 %v786, %v756
        %v788 = vadd.f32 %v787, %v757
        %v789 = vadd.f32 %v788, %v758
        %v790 = vadd.f32 %v789, %v759
        %v791 = vadd.f32 %v790, %v760
        %v792 = vadd.f32 %v791, %v761
        %v793 = vadd.f32 %v792, %v762
        %v794 = vadd.f32 %v793, %v763
        %v795 = vrot.slane %v794, 4
        %v796 = vadd.f32 %v794, %v795
        %v797 = vrot.slane %v796, 2
        %v798 = vadd.f32 %v796, %v797
        %v799 = vrot.slane %v798, 1
        %v800 = vadd.f32 %v798, %v799
        %vm801 = vcmp.eq.s32.totalorder %v493, 0
        %v802 = vsel %vm801, %v662, 0.0
        %vm803 = vcmp.eq.s32.totalorder %v493, 1
        %v804 = vsel %vm803, %v800, 0.0
        %v805 = vadd.f32 %v802, %v804
        %806 = vst [vmem:[%s137] sm:$0xff] %v805
        %s807 = sand.u32 %s71, 1
        %s808 = scalar_lea.sflag [#allocation3], %s807
        %s809 = sand.u32 %s71, 1
        %s810 = smul.addr %s809, 8
        %s811 = scalar_lea.vmem [#allocation2], %s810
        // Predicated region
        $region29: #{tpu_custom_call.1} parent=27 // pred_check
          %p812 = pneg %p81
        $region30: #{tpu_custom_call.1} parent=27 // pred_check_branch
          %814 = sbr.rel (%p812) target = $region32
        $region31: #{tpu_custom_call.1} parent=27 // pred_region
          %s816 = ssub.s32 128, 128
          %817 = vsyncadd %s808, %s816
          %s818 = smul.addr %s16, 128
          %s819 = scalar_lea.hbm %s2, %s818
          %s821 = sshll.u32 %s811, 4
          %s822 = int_to_ptr.vmem [resolvable:$true] %s821
          %824 = dma.vmem_to_hbm [thread:$0]  %s822, 128, %s819, %s808
        $region32: #{tpu_custom_call.1} parent=27 // pred_fallthru
          _
      $region28: #{tpu_custom_call.1} parent=5 // pred_fallthru
        _
      %p825 = scmp.le.s32.totalorder 2, %s11
      // Predicated region
      $region33: #{tpu_custom_call.1} parent=5 // pred_check
        %p826 = pneg %p825
      $region34: #{tpu_custom_call.1} parent=5 // pred_check_branch
        %828 = sbr.rel (%p826) target = $region36
      $region35: #{tpu_custom_call.1} parent=5 // pred_region
        %s829 = ssub.s32 %s11, 2
        // Predicated region
        $region37: #{tpu_custom_call.1} parent=35 // pred_check
          %p830 = pneg %p87
        $region38: #{tpu_custom_call.1} parent=35 // pred_check_branch
          %832 = sbr.rel (%p830) target = $region40
        $region39: #{tpu_custom_call.1} parent=35 // pred_region
          %s833 = sand.u32 %s72, 1
          %s834 = scalar_lea.sflag [#allocation3], %s833
          %s835 = sand.u32 %s72, 1
          %s836 = smul.addr %s835, 8
          %s837 = scalar_lea.vmem [#allocation2], %s836
          %838 = dma.done %s834, 128
        $region40: #{tpu_custom_call.1} parent=35 // pred_fallthru
          _
      $region36: #{tpu_custom_call.1} parent=5 // pred_fallthru
        _
    $region6: #{tpu_custom_call.1} parent=1 // loop_footer
      %s15 = sadd.s32 1, %s11
    $region7: #{tpu_custom_call.1} parent=1 // loop_footer_branch
      %10 = sbr.rel target = $region3
    $region8: #{tpu_custom_call.1} parent=1 // loop_exit
      _
    %839 = vsyncpa [#allocation3], 1
    %s840 = scalar_lea.sflag [#allocation3], 1
    %841 = vsyncpa %s840, 1

</llo_original>
